<compile_context>
chip_gen: v5e
topology: v5e:2x2
jax: 0.10.0
libtpu: 0.0.40
codegen_flags: <defaults>
</compile_context>

<pallas_src>
import functools
import math

import jax
import jax.numpy as jnp
from jax import lax
from jax.experimental import pallas as pl
from jax.experimental.pallas import tpu as pltpu


# --------------------------------------------------------------------------- #
# helpers
# --------------------------------------------------------------------------- #
def _pick_tile(dim, preferred, quantum):
    """Largest tile <= preferred that divides `dim` and is a multiple of `quantum`,
    falling back to the full dimension (full extent is always a legal block).
    NOTE: the full-dim fallback is only intended for small/odd S; K/V are full-S
    resident in kernel 2 anyway, so moderate S is assumed."""
    if dim <= preferred:
        return dim
    t = (preferred // quantum) * quantum
    while t >= quantum:
        if dim % t == 0:
            return t
        t -= quantum
    return dim


# --------------------------------------------------------------------------- #
# Kernel 1: fused QKV projection straight into (B, NH, S, DH) head layout.
#   grid = (B, S//ts); weight (NH, H, 3*DH) is resident (constant block index).
# --------------------------------------------------------------------------- #
def _qkv_heads_kernel(x_ref, w_ref, b_ref, q_ref, k_ref, v_ref, *, num_heads, dh):
    # x_ref: (ts, H)   w_ref: (NH, H, 3*dh)   b_ref: (NH, 1, 3*dh)
    # q_ref/k_ref/v_ref: (NH, ts, dh)
    def body(h, carry):
        acc = jnp.dot(x_ref[...], w_ref[h],
                      preferred_element_type=jnp.float32)       # (ts, 3*dh) fp32
        acc = acc + b_ref[h]                                     # bias (1, 3*dh) fp32
        q_ref[h] = acc[:, :dh].astype(q_ref.dtype)
        k_ref[h] = acc[:, dh:2 * dh].astype(k_ref.dtype)
        v_ref[h] = acc[:, 2 * dh:].astype(v_ref.dtype)
        return carry

    lax.fori_loop(0, num_heads, body, 0)


def _qkv_proj_heads(x, wqkv_h, bqkv_h, *, num_heads, ts):
    B, S, H = x.shape
    dh = H // num_heads
    kernel = functools.partial(_qkv_heads_kernel, num_heads=num_heads, dh=dh)
    head_shape = jax.ShapeDtypeStruct((B, num_heads, S, dh), x.dtype)
    return pl.pallas_call(
        kernel,
        out_shape=(head_shape, head_shape, head_shape),
        grid_spec=pltpu.PrefetchScalarGridSpec(
            num_scalar_prefetch=0,
            grid=(B, S // ts),
            in_specs=[
                pl.BlockSpec((None, ts, H), lambda b, si: (b, si, 0)),           # x tile
                pl.BlockSpec((num_heads, H, 3 * dh), lambda b, si: (0, 0, 0)),   # resident W
                pl.BlockSpec((num_heads, 1, 3 * dh), lambda b, si: (0, 0, 0)),   # resident bias
            ],
            out_specs=[
                pl.BlockSpec((None, num_heads, ts, dh), lambda b, si: (b, 0, si, 0)),
                pl.BlockSpec((None, num_heads, ts, dh), lambda b, si: (b, 0, si, 0)),
                pl.BlockSpec((None, num_heads, ts, dh), lambda b, si: (b, 0, si, 0)),
            ],
        ),
        compiler_params=pltpu.CompilerParams(
            dimension_semantics=("parallel", "parallel"),
            vmem_limit_bytes=48 * 1024 * 1024,   # v7x-safe; use bf16 weights for big models
        ),
    )(x, wqkv_h, bqkv_h)


# --------------------------------------------------------------------------- #
# Kernel 2: attention (full-S K/V resident, head loop in-kernel) + fused output
# projection.  grid = (B, S//tq).
# --------------------------------------------------------------------------- #
def _attn_out_proj_kernel(q_ref, k_ref, v_ref, wpo_ref, bpo_ref, o_ref, ctx_sc,
                          *, num_heads):
    # q_ref: (NH, tq, dh)  k_ref/v_ref: (NH, S, dh)  wpo_ref: (H, H)  bpo_ref: (1, H)
    # o_ref: (tq, H)       ctx_sc: (NH, tq, dh) fp32
    def body(h, carry):
        q = q_ref[h]                                  # (tq, dh) -- scale folded into Wq/bq
        k = k_ref[h]                                  # (S, dh)
        v = v_ref[h]                                  # (S, dh)
        # scores via dot_general contracting the last dims (no explicit transpose of K)
        s = lax.dot_general(q, k, (((1,), (1,)), ((), ())),
                            preferred_element_type=jnp.float32)        # (tq, S)
        m = jnp.max(s, axis=-1, keepdims=True)
        p = jnp.exp(s - m)
        l = jnp.sum(p, axis=-1, keepdims=True)
        ctx = jnp.dot(p.astype(v.dtype), v,
                      preferred_element_type=jnp.float32)              # (tq, dh)
        ctx_sc[h] = ctx * pl.reciprocal(l, approx=True)
        return carry

    lax.fori_loop(0, num_heads, body, 0)

    # Assemble (tq, H) context (static lane concat) and do ONE full-depth matmul with the
    # pre-fused (proj @ output.dense) weight — no per-head K=dh epilogue dots.
    ctx_all = jnp.concatenate([ctx_sc[h] for h in range(num_heads)], axis=-1)  # (tq, H)
    out = jnp.dot(ctx_all.astype(wpo_ref.dtype), wpo_ref[...],
                  preferred_element_type=jnp.float32)                          # (tq, H)
    o_ref[...] = (out + bpo_ref[0]).astype(o_ref.dtype)


def _attention_out_proj(q, k, v, wpo, bpo, *, out_dtype, tq):
    B, NH, S, DH = q.shape
    H = NH * DH
    kernel = functools.partial(_attn_out_proj_kernel, num_heads=NH)
    return pl.pallas_call(
        kernel,
        out_shape=jax.ShapeDtypeStruct((B, S, H), out_dtype),
        grid_spec=pltpu.PrefetchScalarGridSpec(
            num_scalar_prefetch=0,
            grid=(B, S // tq),
            in_specs=[
                pl.BlockSpec((None, NH, tq, DH), lambda b, qi: (b, 0, qi, 0)),  # Q tile
                pl.BlockSpec((None, NH, S, DH), lambda b, qi: (b, 0, 0, 0)),    # full-S K (resident per b)
                pl.BlockSpec((None, NH, S, DH), lambda b, qi: (b, 0, 0, 0)),    # full-S V (resident per b)
                pl.BlockSpec((H, H), lambda b, qi: (0, 0)),                     # resident fused Wpo
                pl.BlockSpec((1, H), lambda b, qi: (0, 0)),                     # fused bias
            ],
            out_specs=pl.BlockSpec((None, tq, H), lambda b, qi: (b, qi, 0)),
            scratch_shapes=[pltpu.VMEM((NH, tq, DH), jnp.float32)],             # per-head ctx
        ),
        compiler_params=pltpu.CompilerParams(
            dimension_semantics=("parallel", "parallel"),
            vmem_limit_bytes=48 * 1024 * 1024,   # v7x-safe; v5e/v6e can raise for larger tq
        ),
    )(q, k, v, wpo, bpo)


# --------------------------------------------------------------------------- #
# One-time parameter preparation (do NOT call per forward pass)
# --------------------------------------------------------------------------- #
def prepare_params(params, num_heads, compute_dtype=jnp.float32):
    """Transpose weights to (in, out), build per-head fused [Wq_h|Wk_h|Wv_h] slabs,
    fold 1/sqrt(dh) into Wq/bq, and pre-multiply attention.proj with output.dense
    (both dropouts are 0.0, so the fusion is exact)."""
    H = params["q_w"].shape[0]
    assert H % num_heads == 0
    dh = H // num_heads
    scale = 1.0 / math.sqrt(dh)

    wq = jnp.asarray(params["q_w"], jnp.float32).T * scale     # (H_in, H_out)
    bq = jnp.asarray(params["q_b"], jnp.float32) * scale
    wk = jnp.asarray(params["k_w"], jnp.float32).T
    bk = jnp.asarray(params["k_b"], jnp.float32)
    wv = jnp.asarray(params["v_w"], jnp.float32).T
    bv = jnp.asarray(params["v_b"], jnp.float32)

    def per_head_w(w):   # (H, H) -> (NH, H, dh); head h = output columns [h*dh,(h+1)*dh)
        return w.reshape(H, num_heads, dh).transpose(1, 0, 2)

    def per_head_b(b):   # (H,) -> (NH, 1, dh)
        return b.reshape(num_heads, 1, dh)

    wqkv_h = jnp.concatenate([per_head_w(wq), per_head_w(wk), per_head_w(wv)],
                             axis=-1)                                   # (NH, H, 3*dh)
    bqkv_h = jnp.concatenate([per_head_b(bq), per_head_b(bk), per_head_b(bv)],
                             axis=-1)                                   # (NH, 1, 3*dh)

    wp = jnp.asarray(params["proj_w"], jnp.float32)                     # (out, in)
    bp = jnp.asarray(params["proj_b"], jnp.float32)
    wo = jnp.asarray(params["out_w"], jnp.float32)
    bo = jnp.asarray(params["out_b"], jnp.float32)
    wpo = wp.T @ wo.T                                                   # (H, H) (in, out)
    bpo = (bp @ wo.T + bo).reshape(1, H)                                # (1, H)

    return {
        "wqkv_h": wqkv_h.astype(compute_dtype),   # MXU operand dtype (bf16 on v6e/v7x)
        "bqkv_h": bqkv_h,                         # biases stay fp32 (added to fp32 acc)
        "wpo": wpo.astype(compute_dtype),
        "bpo": bpo,
    }


def vjepa_attention(x, prepared, num_heads, *, ts=None, tq=None):
    """x: (B, S, H). prepared: output of prepare_params()."""
    B, S, H = x.shape
    assert H % num_heads == 0
    compute_dtype = prepared["wqkv_h"].dtype
    xc = x.astype(compute_dtype)

    ts = ts or _pick_tile(S, 512, 8)
    tq = tq or _pick_tile(S, 256, 8)

    # QKV projection directly into (B, NH, S, DH) layout (no HBM transpose afterwards).
    q, k, v = _qkv_proj_heads(xc, prepared["wqkv_h"], prepared["bqkv_h"],
                              num_heads=num_heads, ts=ts)
    # Attention + fused (proj @ output.dense) projection.
    return _attention_out_proj(q, k, v, prepared["wpo"], prepared["bpo"],
                               out_dtype=x.dtype, tq=tq)


# --------------------------------------------------------------------------- #
# Plain-JAX reference (mirrors the PyTorch forward) for verification
# --------------------------------------------------------------------------- #
def _reference(x, params, num_heads):
    B, S, H = x.shape
    dh = H // num_heads
    lin = lambda t, w, b: jnp.einsum("bsh,oh->bso", t, w) + b
    q = lin(x, params["q_w"], params["q_b"]).reshape(B, S, num_heads, dh).transpose(0, 2, 1, 3)
    k = lin(x, params["k_w"], params["k_b"]).reshape(B, S, num_heads, dh).transpose(0, 2, 1, 3)
    v = lin(x, params["v_w"], params["v_b"]).reshape(B, S, num_heads, dh).transpose(0, 2, 1, 3)
    scores = jnp.einsum("bhqd,bhkd->bhqk", q, k) / math.sqrt(dh)
    probs = jax.nn.softmax(scores, axis=-1)
    ctx = jnp.einsum("bhqk,bhkd->bhqd", probs, v).transpose(0, 2, 1, 3).reshape(B, S, H)
    ctx = lin(ctx, params["proj_w"], params["proj_b"])
    return lin(ctx, params["out_w"], params["out_b"])


# TODO(synk): head_mask / output_attentions code paths are not implemented
# (module defaults are None / False); attention/hidden dropout are identity (p=0.0).

if __name__ == "__main__":
    B, S, H = 2, 8, 32
    num_heads = 4
    initializer_range = 0.02

    key = jax.random.PRNGKey(0)
    keys = jax.random.split(key, 11)

    params = {
        "q_w": jax.random.normal(keys[0], (H, H), jnp.float32) * initializer_range,
        "q_b": jax.random.normal(keys[1], (H,), jnp.float32) * initializer_range,
        "k_w": jax.random.normal(keys[2], (H, H), jnp.float32) * initializer_range,
        "k_b": jax.random.normal(keys[3], (H,), jnp.float32) * initializer_range,
        "v_w": jax.random.normal(keys[4], (H, H), jnp.float32) * initializer_range,
        "v_b": jax.random.normal(keys[5], (H,), jnp.float32) * initializer_range,
        "proj_w": jax.random.normal(keys[6], (H, H), jnp.float32) * initializer_range,
        "proj_b": jax.random.normal(keys[7], (H,), jnp.float32) * initializer_range,
        "out_w": jax.random.normal(keys[8], (H, H), jnp.float32) * initializer_range,
        "out_b": jax.random.normal(keys[9], (H,), jnp.float32) * initializer_range,
    }
    x = jax.random.normal(keys[10], (B, S, H), jnp.float32)

    ref = _reference(x, params, num_heads)

    # fp32 MXU-operand path (tight check)
    prepared = prepare_params(params, num_heads)                 # one-time prep
    out = jax.block_until_ready(vjepa_attention(x, prepared, num_heads))
    assert out.shape == (B, S, H)
    assert jnp.allclose(out, ref, atol=2e-3, rtol=2e-3), "fp32 path mismatch vs reference"

    # bf16 MXU-operand path (recommended on v6e/v7x), fp32 accumulation inside
    prepared_bf16 = prepare_params(params, num_heads, compute_dtype=jnp.bfloat16)
    out_bf16 = jax.block_until_ready(vjepa_attention(x, prepared_bf16, num_heads))
    assert jnp.allclose(out_bf16, ref, atol=5e-2, rtol=5e-2), "bf16 path mismatch vs reference"

    print("KERNEL_OK")
</pallas_src>

<mosaic_0001>
module attributes {stable_mosaic.version = 11 : i64} {
  func.func @_qkv_heads_kernel(%arg0: i32, %arg1: i32, %arg2: memref<1x8x32xf32, #tpu.memory_space<vmem>>, %arg3: memref<4x32x24xf32, #tpu.memory_space<vmem>>, %arg4: memref<4x1x24xf32, #tpu.memory_space<vmem>>, %arg5: memref<1x4x8x8xf32, #tpu.memory_space<vmem>>, %arg6: memref<1x4x8x8xf32, #tpu.memory_space<vmem>>, %arg7: memref<1x4x8x8xf32, #tpu.memory_space<vmem>>) attributes {dimension_semantics = [#tpu.dimension_semantics<parallel>, #tpu.dimension_semantics<parallel>], iteration_bounds = array<i64: 2, 1>, scalar_prefetch = 0 : i64, scratch_operands = 0 : i64, tpu.core_type = #tpu.core_type<tc>, window_params = [{transform_indices = @transform_0, window_bounds = array<i64: 1, 8, 32>}, {pipeline_mode = #tpu.pipeline_mode<synchronous>, transform_indices = @transform_1, window_bounds = array<i64: 4, 32, 24>}, {pipeline_mode = #tpu.pipeline_mode<synchronous>, transform_indices = @transform_2, window_bounds = array<i64: 4, 1, 24>}, {transform_indices = @transform_3, window_bounds = array<i64: 1, 4, 8, 8>}, {transform_indices = @transform_4, window_bounds = array<i64: 1, 4, 8, 8>}, {transform_indices = @transform_5, window_bounds = array<i64: 1, 4, 8, 8>}]} {
    %c0_i32 = arith.constant 0 : i32
    %c4_i32 = arith.constant 4 : i32
    %0 = arith.addi %c0_i32, %c4_i32 : i32
    %c1_i32 = arith.constant 1 : i32
    scf.for %arg8 = %c0_i32 to %0 step %c1_i32  : i32 {
      %c0 = arith.constant 0 : index
      %c0_1 = arith.constant 0 : index
      %c0_2 = arith.constant 0 : index
      %1 = vector.load %arg2[%c0, %c0_1, %c0_2] : memref<1x8x32xf32, #tpu.memory_space<vmem>>, vector<1x8x32xf32>
      %2 = vector.shape_cast %1 : vector<1x8x32xf32> to vector<8x32xf32>
      %3 = arith.index_cast %arg8 : i32 to index
      %c0_3 = arith.constant 0 : index
      %c0_4 = arith.constant 0 : index
      %4 = vector.load %arg3[%3, %c0_3, %c0_4] : memref<4x32x24xf32, #tpu.memory_space<vmem>>, vector<1x32x24xf32>
      %5 = vector.shape_cast %4 : vector<1x32x24xf32> to vector<32x24xf32>
      %cst = arith.constant dense<0.000000e+00> : vector<8x24xf32>
      %6 = tpu.matmul %2, %5, %cst {dimension_numbers = #tpu.dot_dimension_numbers<[1], [0], [0], [1], [0, 0, 1, 1], [], []>} : vector<8x32xf32>, vector<32x24xf32>, vector<8x24xf32> -> vector<8x24xf32>
      %7 = arith.index_cast %arg8 : i32 to index
      %c0_5 = arith.constant 0 : index
      %c0_6 = arith.constant 0 : index
      %8 = vector.load %arg4[%7, %c0_5, %c0_6] : memref<4x1x24xf32, #tpu.memory_space<vmem>>, vector<1x1x24xf32>
      %9 = vector.shape_cast %8 : vector<1x1x24xf32> to vector<1x24xf32>
      %10 = vector.broadcast %9 : vector<1x24xf32> to vector<8x24xf32>
      %11 = arith.addf %6, %10 : vector<8x24xf32>
      %12 = vector.extract_strided_slice %11 {offsets = [0, 0], sizes = [8, 8], strides = [1, 1]} : vector<8x24xf32> to vector<8x8xf32>
      %c0_7 = arith.constant 0 : index
      %13 = arith.index_cast %arg8 : i32 to index
      %c0_8 = arith.constant 0 : index
      %c0_9 = arith.constant 0 : index
      %14 = vector.load %arg5[%c0_7, %13, %c0_8, %c0_9] : memref<1x4x8x8xf32, #tpu.memory_space<vmem>>, vector<1x1x8x8xf32>
      %15 = vector.shape_cast %14 : vector<1x1x8x8xf32> to vector<8x8xf32>
      %16 = vector.shape_cast %12 : vector<8x8xf32> to vector<1x1x8x8xf32>
      tpu.vector_store %arg5[%c0_7, %13, %c0_8, %c0_9], %16 {strides = array<i32>} : memref<1x4x8x8xf32, #tpu.memory_space<vmem>>, vector<1x1x8x8xf32>,
      %17 = vector.extract_strided_slice %11 {offsets = [0, 8], sizes = [8, 8], strides = [1, 1]} : vector<8x24xf32> to vector<8x8xf32>
      %c0_10 = arith.constant 0 : index
      %18 = arith.index_cast %arg8 : i32 to index
      %c0_11 = arith.constant 0 : index
      %c0_12 = arith.constant 0 : index
      %19 = vector.load %arg6[%c0_10, %18, %c0_11, %c0_12] : memref<1x4x8x8xf32, #tpu.memory_space<vmem>>, vector<1x1x8x8xf32>
      %20 = vector.shape_cast %19 : vector<1x1x8x8xf32> to vector<8x8xf32>
      %21 = vector.shape_cast %17 : vector<8x8xf32> to vector<1x1x8x8xf32>
      tpu.vector_store %arg6[%c0_10, %18, %c0_11, %c0_12], %21 {strides = array<i32>} : memref<1x4x8x8xf32, #tpu.memory_space<vmem>>, vector<1x1x8x8xf32>,
      %22 = vector.extract_strided_slice %11 {offsets = [0, 16], sizes = [8, 8], strides = [1, 1]} : vector<8x24xf32> to vector<8x8xf32>
      %c0_13 = arith.constant 0 : index
      %23 = arith.index_cast %arg8 : i32 to index
      %c0_14 = arith.constant 0 : index
      %c0_15 = arith.constant 0 : index
      %24 = vector.load %arg7[%c0_13, %23, %c0_14, %c0_15] : memref<1x4x8x8xf32, #tpu.memory_space<vmem>>, vector<1x1x8x8xf32>
      %25 = vector.shape_cast %24 : vector<1x1x8x8xf32> to vector<8x8xf32>
      %26 = vector.shape_cast %22 : vector<8x8xf32> to vector<1x1x8x8xf32>
      tpu.vector_store %arg7[%c0_13, %23, %c0_14, %c0_15], %26 {strides = array<i32>} : memref<1x4x8x8xf32, #tpu.memory_space<vmem>>, vector<1x1x8x8xf32>,
    }
    %c4_i32_0 = arith.constant 4 : i32
    return
  }
  func.func @transform_0(%arg0: i32, %arg1: i32) -> (i32, i32, i32) {
    %c0_i32 = arith.constant 0 : i32
    %c0_i32_0 = arith.constant 0 : i32
    return %arg0, %arg1, %c0_i32 : i32, i32, i32
  }
  func.func @transform_1(%arg0: i32, %arg1: i32) -> (i32, i32, i32) {
    %c0_i32 = arith.constant 0 : i32
    %c0_i32_0 = arith.constant 0 : i32
    %c0_i32_1 = arith.constant 0 : i32
    %c0_i32_2 = arith.constant 0 : i32
    return %c0_i32, %c0_i32_0, %c0_i32_1 : i32, i32, i32
  }
  func.func @transform_2(%arg0: i32, %arg1: i32) -> (i32, i32, i32) {
    %c0_i32 = arith.constant 0 : i32
    %c0_i32_0 = arith.constant 0 : i32
    %c0_i32_1 = arith.constant 0 : i32
    %c0_i32_2 = arith.constant 0 : i32
    return %c0_i32, %c0_i32_0, %c0_i32_1 : i32, i32, i32
  }
  func.func @transform_3(%arg0: i32, %arg1: i32) -> (i32, i32, i32, i32) {
    %c0_i32 = arith.constant 0 : i32
    %c0_i32_0 = arith.constant 0 : i32
    %c0_i32_1 = arith.constant 0 : i32
    return %arg0, %c0_i32, %arg1, %c0_i32_0 : i32, i32, i32, i32
  }
  func.func @transform_4(%arg0: i32, %arg1: i32) -> (i32, i32, i32, i32) {
    %c0_i32 = arith.constant 0 : i32
    %c0_i32_0 = arith.constant 0 : i32
    %c0_i32_1 = arith.constant 0 : i32
    return %arg0, %c0_i32, %arg1, %c0_i32_0 : i32, i32, i32, i32
  }
  func.func @transform_5(%arg0: i32, %arg1: i32) -> (i32, i32, i32, i32) {
    %c0_i32 = arith.constant 0 : i32
    %c0_i32_0 = arith.constant 0 : i32
    %c0_i32_1 = arith.constant 0 : i32
    return %arg0, %c0_i32, %arg1, %c0_i32_0 : i32, i32, i32, i32
  }
}

</mosaic_0001>

<llo_original>
// kernel: tpu_custom_call.1
$region0: #{tpu_custom_call.1}
  #allocation0 [shape = 'u32[]', space=smem, size = 0x4, offset = 0x4, fixed_abs, tag = 'smem constant byte address 0x4 - core index']
  #allocation1 [shape = 'u32[72,128]{1,0:T(1,128)}', space=vmem, size = 0x9000, scoped, tag = 'internal scratch']
  %s0 = inlined_call_operand.vmem [shape: f32[2,8,32], index: 0, kind: input, shape index: {}]
  %s1 = inlined_call_operand.vmem [shape: f32[4,32,24], index: 1, kind: input, shape index: {}]
  %s2 = inlined_call_operand.vmem [shape: f32[4,1,24], index: 2, kind: input, shape index: {}]
  %s3 = inlined_call_operand.hbm [shape: f32[2,4,8,8], index: 3, kind: output, shape index: {0}]
  %s4 = inlined_call_operand.hbm [shape: f32[2,4,8,8], index: 4, kind: output, shape index: {1}]
  %s5 = inlined_call_operand.hbm [shape: f32[2,4,8,8], index: 5, kind: output, shape index: {2}]
  %6 = xla_tuple %s3, %s4, %s5
  %s7 = sld [smem:[#allocation0]]
  $region68: #{tpu_custom_call.1} parent=0
    _
  %s9 = ssub.s32 1, %s7
  %s10 = scalar_select 0, %s9, %s7
  $region1: #{tpu_custom_call.1} parent=0
    #allocation2 [shape = 'u8[32768]{0}', space=vmem, size = 0x8000, scoped, tag = 'output window, operand 0']
    #allocation3 [shape = 's32[2]{0}', space=sflag, size = 0x8, scoped, tag = 'scoped memory for tpu_custom_call.1']
    #allocation4 [shape = 'u8[32768]{0}', space=vmem, size = 0x8000, scoped, tag = 'output window, operand 1']
    #allocation5 [shape = 's32[2]{0}', space=sflag, size = 0x8, scoped, tag = 'scoped memory for tpu_custom_call.1']
    #allocation6 [shape = 'u8[32768]{0}', space=vmem, size = 0x8000, scoped, tag = 'output window, operand 2']
    %11 = vsyncpa [#allocation3], 0
    %s12 = scalar_lea.sflag [#allocation3], 1
    %13 = vsyncpa %s12, 0
    %14 = vsyncpa [#allocation5], 0
    %s15 = scalar_lea.sflag [#allocation5], 1
    %16 = vsyncpa %s15, 0
    loop: start=0, step=1, limit=4
    $region2: #{tpu_custom_call.1} parent=1 // loop_pre_header
      _
    $region3: #{tpu_custom_call.1} parent=1 // loop_header
      %s18 = sphi 0, %s22
      %p19 = scmp.ge.s32.totalorder %s18, 4
      %s25 = sphi 0, %s37
      %s26 = sphi 0, %s33
      %s27 = sphi 0, %s25
      %s28 = sphi 0, %s26
      %s29 = sphi 0, %s27
      %s30 = sphi 0, %s28
      %s42 = sphi 0, %s44
      %s45 = sphi 0, %s42
      %s46 = sphi 0, %s45
      %s62 = sphi 0, %s46
      %s66 = sphi 0, %s66
      %s68 = sphi 0, %s66
      %s69 = sphi 0, %s68
      %s83 = sphi 0, %s69
      %s87 = sphi 0, %s87
      %s89 = sphi 0, %s87
      %s90 = sphi 0, %s89
      %s104 = sphi 0, %s90
      %s112 = sphi 0, %s114
      %s115 = sphi 0, %s112
      %s116 = sphi 0, %s115
      %s132 = sphi 0, %s116
      %s140 = sphi 0, %s142
      %s143 = sphi 0, %s140
      %s144 = sphi 0, %s143
      %s160 = sphi 0, %s144
      %s168 = sphi 0, %s170
      %s171 = sphi 0, %s168
      %s172 = sphi 0, %s171
      %s188 = sphi 0, %s172
    $region4: #{tpu_custom_call.1} parent=1 // loop_header_branch
      %21 = sbr.rel (%p19) target = $region8
    $region5: #{tpu_custom_call.1} parent=1 // loop_body
      %s23 = ssub.s32 %s18, 1
      %s24 = ssub.s32 %s18, 2
      %s31 = sadd.s32 1, %s26
      %p32 = scmp.ge.s32.totalorder %s31, 1
      %s33 = scalar_select %p32, 0, %s31
      %s34 = sadd.s32 1, %s25
      %s35 = scalar_select %p32, %s34, %s25
      %p36 = scmp.ge.s32.totalorder %s35, 2
      %s37 = scalar_select %p36, 0, %s35
      %s38 = ssub.s32 %s25, %s37
      %s39 = ssub.s32 %s26, %s33
      %s40 = sor.u32 %s38, %s39
      %p41 = scmp.eq.s32.totalorder %s40, 0
      %s43 = sadd.s32 %s42, 1
      %s44 = scalar_select %p41, %s42, %s43
      %p47 = pneg %p41
      %p48 = scmp.eq.s32.totalorder %s18, 1
      %p49 = por %p47, %p48
      %p50 = scmp.ne.s32.totalorder %s42, %s45
      %p51 = scmp.eq.s32.totalorder %s18, 0
      %p52 = por %p50, %p51
      %p53 = scmp.ne.s32.totalorder %s42, %s45
      %p54 = scmp.eq.s32.totalorder %s23, 1
      %p55 = por %p53, %p54
      %p56 = scmp.ne.s32.totalorder %s45, %s46
      %p57 = scmp.eq.s32.totalorder %s23, 0
      %p58 = por %p56, %p57
      %p59 = scmp.ne.s32.totalorder %s45, %s46
      %p60 = scmp.eq.s32.totalorder %s24, 1
      %p61 = por %p59, %p60
      %p63 = scmp.ne.s32.totalorder %s46, %s62
      %p64 = scmp.eq.s32.totalorder %s24, 0
      %p65 = por %p63, %p64
      %s67 = sadd.s32 %s66, 1
      %p70 = scmp.eq.s32.totalorder %s18, 1
      %p71 = scmp.ne.s32.totalorder %s66, %s68
      %p72 = scmp.eq.s32.totalorder %s18, 0
      %p73 = por %p71, %p72
      %p74 = scmp.ne.s32.totalorder %s66, %s68
      %p75 = scmp.eq.s32.totalorder %s23, 1
      %p76 = por %p74, %p75
      %p77 = scmp.ne.s32.totalorder %s68, %s69
      %p78 = scmp.eq.s32.totalorder %s23, 0
      %p79 = por %p77, %p78
      %p80 = scmp.ne.s32.totalorder %s68, %s69
      %p81 = scmp.eq.s32.totalorder %s24, 1
      %p82 = por %p80, %p81
      %p84 = scmp.ne.s32.totalorder %s69, %s83
      %p85 = scmp.eq.s32.totalorder %s24, 0
      %p86 = por %p84, %p85
      %s88 = sadd.s32 %s87, 1
      %p91 = scmp.eq.s32.totalorder %s18, 1
      %p92 = scmp.ne.s32.totalorder %s87, %s89
      %p93 = scmp.eq.s32.totalorder %s18, 0
      %p94 = por %p92, %p93
      %p95 = scmp.ne.s32.totalorder %s87, %s89
      %p96 = scmp.eq.s32.totalorder %s23, 1
      %p97 = por %p95, %p96
      %p98 = scmp.ne.s32.totalorder %s89, %s90
      %p99 = scmp.eq.s32.totalorder %s23, 0
      %p100 = por %p98, %p99
      %p101 = scmp.ne.s32.totalorder %s89, %s90
      %p102 = scmp.eq.s32.totalorder %s24, 1
      %p103 = por %p101, %p102
      %p105 = scmp.ne.s32.totalorder %s90, %s104
      %p106 = scmp.eq.s32.totalorder %s24, 0
      %p107 = por %p105, %p106
      %s108 = ssub.s32 %s25, %s37
      %s109 = ssub.s32 %s26, %s33
      %s110 = sor.u32 %s108, %s109
      %p111 = scmp.eq.s32.totalorder %s110, 0
      %s113 = sadd.s32 %s112, 1
      %s114 = scalar_select %p111, %s112, %s113
      %p117 = pneg %p111
      %p118 = scmp.eq.s32.totalorder %s18, 1
      %p119 = por %p117, %p118
      %p120 = scmp.ne.s32.totalorder %s112, %s115
      %p121 = scmp.eq.s32.totalorder %s18, 0
      %p122 = por %p120, %p121
      %p123 = scmp.ne.s32.totalorder %s112, %s115
      %p124 = scmp.eq.s32.totalorder %s23, 1
      %p125 = por %p123, %p124
      %p126 = scmp.ne.s32.totalorder %s115, %s116
      %p127 = scmp.eq.s32.totalorder %s23, 0
      %p128 = por %p126, %p127
      %p129 = scmp.ne.s32.totalorder %s115, %s116
      %p130 = scmp.eq.s32.totalorder %s24, 1
      %p131 = por %p129, %p130
      %p133 = scmp.ne.s32.totalorder %s116, %s132
      %p134 = scmp.eq.s32.totalorder %s24, 0
      %p135 = por %p133, %p134
      %s136 = ssub.s32 %s25, %s37
      %s137 = ssub.s32 %s26, %s33
      %s138 = sor.u32 %s136, %s137
      %p139 = scmp.eq.s32.totalorder %s138, 0
      %s141 = sadd.s32 %s140, 1
      %s142 = scalar_select %p139, %s140, %s141
      %p145 = pneg %p139
      %p146 = scmp.eq.s32.totalorder %s18, 1
      %p147 = por %p145, %p146
      %p148 = scmp.ne.s32.totalorder %s140, %s143
      %p149 = scmp.eq.s32.totalorder %s18, 0
      %p150 = por %p148, %p149
      %p151 = scmp.ne.s32.totalorder %s140, %s143
      %p152 = scmp.eq.s32.totalorder %s23, 1
      %p153 = por %p151, %p152
      %p154 = scmp.ne.s32.totalorder %s143, %s144
      %p155 = scmp.eq.s32.totalorder %s23, 0
      %p156 = por %p154, %p155
      %p157 = scmp.ne.s32.totalorder %s143, %s144
      %p158 = scmp.eq.s32.totalorder %s24, 1
      %p159 = por %p157, %p158
      %p161 = scmp.ne.s32.totalorder %s144, %s160
      %p162 = scmp.eq.s32.totalorder %s24, 0
      %p163 = por %p161, %p162
      %s164 = ssub.s32 %s25, %s37
      %s165 = ssub.s32 %s26, %s33
      %s166 = sor.u32 %s164, %s165
      %p167 = scmp.eq.s32.totalorder %s166, 0
      %s169 = sadd.s32 %s168, 1
      %s170 = scalar_select %p167, %s168, %s169
      %p173 = pneg %p167
      %p174 = scmp.eq.s32.totalorder %s18, 1
      %p175 = por %p173, %p174
      %p176 = scmp.ne.s32.totalorder %s168, %s171
      %p177 = scmp.eq.s32.totalorder %s18, 0
      %p178 = por %p176, %p177
      %p179 = scmp.ne.s32.totalorder %s168, %s171
      %p180 = scmp.eq.s32.totalorder %s23, 1
      %p181 = por %p179, %p180
      %p182 = scmp.ne.s32.totalorder %s171, %s172
      %p183 = scmp.eq.s32.totalorder %s23, 0
      %p184 = por %p182, %p183
      %p185 = scmp.ne.s32.totalorder %s171, %s172
      %p186 = scmp.eq.s32.totalorder %s24, 1
      %p187 = por %p185, %p186
      %p189 = scmp.ne.s32.totalorder %s172, %s188
      %p190 = scmp.eq.s32.totalorder %s24, 0
      %p191 = por %p189, %p190
      %p192 = scmp.le.s32.totalorder 1, %s18
      %p193 = scmp.lt.s32.totalorder %s18, 3
      %p194 = pnand %p192, %p193
      %p195 = pneg %p194
      // Predicated region
      $region9: #{tpu_custom_call.1} parent=5 // pred_check
        _
      $region10: #{tpu_custom_call.1} parent=5 // pred_check_branch
        %197 = sbr.rel (%p194) target = $region12
      $region11: #{tpu_custom_call.1} parent=5 // pred_region
        %s198 = ssub.s32 %s18, 1
        // Predicated region
        $region13: #{tpu_custom_call.1} parent=11 // pred_check
          %p199 = pneg %p79
        $region14: #{tpu_custom_call.1} parent=11 // pred_check_branch
          %201 = sbr.rel (%p199) target = $region16
        $region15: #{tpu_custom_call.1} parent=11 // pred_region
          _
        $region16: #{tpu_custom_call.1} parent=11 // pred_fallthru
          _
        // Predicated region
        $region17: #{tpu_custom_call.1} parent=11 // pred_check
          %p202 = pneg %p100
        $region18: #{tpu_custom_call.1} parent=11 // pred_check_branch
          %204 = sbr.rel (%p202) target = $region20
        $region19: #{tpu_custom_call.1} parent=11 // pred_region
          _
        $region20: #{tpu_custom_call.1} parent=11 // pred_fallthru
          _
      $region12: #{tpu_custom_call.1} parent=5 // pred_fallthru
        _
      %p205 = scmp.lt.s32.totalorder %s18, 2
      // Predicated region
      $region21: #{tpu_custom_call.1} parent=5 // pred_check
        %p206 = pneg %p205
      $region22: #{tpu_custom_call.1} parent=5 // pred_check_branch
        %208 = sbr.rel (%p206) target = $region24
      $region23: #{tpu_custom_call.1} parent=5 // pred_region
        // Predicated region
        $region25: #{tpu_custom_call.1} parent=23 // pred_check
          %p209 = pneg %p52
        $region26: #{tpu_custom_call.1} parent=23 // pred_check_branch
          %211 = sbr.rel (%p209) target = $region28
        $region27: #{tpu_custom_call.1} parent=23 // pred_region
          %p212 = scmp.lt.s32.totalorder %s25, 1
          %s213 = scalar_select %p212, %s25, 1
          %p214 = scmp.lt.s32.totalorder %s26, 0
          %s215 = scalar_select %p214, %s26, 0
          %s216 = sadd.s32 %s215, %s213
          %s217 = smul.addr %s216, 8
          %s218 = scalar_lea.vmem %s0, %s217
        $region28: #{tpu_custom_call.1} parent=23 // pred_fallthru
          _
      $region24: #{tpu_custom_call.1} parent=5 // pred_fallthru
        _
      %p219 = scmp.le.s32.totalorder 1, %s18
      %p220 = scmp.lt.s32.totalorder %s18, 3
      %p221 = pnand %p219, %p220
      %p222 = pneg %p221
      // Predicated region
      $region29: #{tpu_custom_call.1} parent=5 // pred_check
        _
      $region30: #{tpu_custom_call.1} parent=5 // pred_check_branch
        %224 = sbr.rel (%p221) target = $region32
      $region31: #{tpu_custom_call.1} parent=5 // pred_region
        %s225 = ssub.s32 %s18, 1
        %p226 = scmp.lt.s32.totalorder %s27, 1
        %s227 = scalar_select %p226, %s27, 1
        %p228 = scmp.lt.s32.totalorder %s28, 0
        %s229 = scalar_select %p228, %s28, 0
        %s230 = sadd.s32 %s229, %s227
        %s231 = smul.addr %s230, 8
        %s232 = scalar_lea.vmem %s0, %s231
        %p233 = pneg %p58
        %p234 = pneg %p55
        %p235 = pneg %p79
        %p236 = pneg %p76
        %p237 = pneg %p100
        %p238 = pneg %p97
        %p239 = pneg %p128
        %p240 = pneg %p125
        %s241 = sand.u32 %s115, 1
        %s242 = scalar_lea.sflag [#allocation3], %s241
        %s243 = sand.u32 %s115, 1
        %s244 = smul.addr %s243, 32
        %s245 = scalar_lea.vmem [#allocation2], %s244
        %p246 = pneg %p156
        %p247 = pneg %p153
        %s248 = sand.u32 %s23, 1
        %s249 = scalar_lea.sflag [#allocation5], %s248
        %s250 = sand.u32 %s143, 1
        %s251 = smul.addr %s250, 32
        %s252 = scalar_lea.vmem [#allocation4], %s251
        %p253 = pneg %p184
        %p254 = pneg %p181
        %s255 = sand.u32 %s23, 1
        %s256 = scalar_lea.sflag [#allocation5], %s255
        %s257 = sand.u32 %s171, 1
        %s258 = smul.addr %s257, 32
        %s259 = scalar_lea.vmem [#allocation6], %s258
        %p260 = scmp.lt.s32.totalorder %s27, 1
        %s261 = scalar_select %p260, %s27, 1
        %p262 = scmp.lt.s32.totalorder %s28, 0
        %s263 = scalar_select %p262, %s28, 0
        %s264 = sadd.s32 %s263, %s261
        %s265 = smul.addr %s264, 8
        %s266 = scalar_lea.vmem %s0, %s265
        loop: start=0, step=1, limit=4
        $region33: #{tpu_custom_call.1} parent=31 // loop_pre_header
          _
        $region34: #{tpu_custom_call.1} parent=31 // loop_header
          %s268 = sphi 0, %s272
          %p269 = scmp.ge.s32.totalorder %s268, 4
        $region35: #{tpu_custom_call.1} parent=31 // loop_header_branch
          %271 = sbr.rel (%p269) target = $region39
        $region36: #{tpu_custom_call.1} parent=31 // loop_body
          %v273 = vld [vmem:[%s266] sm:$0xff]
          %s274 = smul.u32 %s268, 32
          %s275 = scalar_lea.vmem %s1, %s274
          %v276 = vld [vmem:[%s275] sm:$0xff]
          %v277 = vld [vmem:[%s275 + $0x8] sm:$0xff]
          %v278 = vld [vmem:[%s275 + $0x10] sm:$0xff]
          %v279 = vld [vmem:[%s275 + $0x18] sm:$0xff]
          %s280 = scalar_lea.vmem %s2, %s268
          %v281 = vld [vmem:[%s280] sm:$0x1]
          %v283 = vperm.slane %v281, 0
          %vm285 = vcmask 261120
          %v287 = vsel %vm285, %v273, 0
          %289 = vmatpush.msra.mxu0 0.0
          %290 = vmatpush.msra.mxu0 0.0
          %291 = vmatpush.msra.mxu0 0.0
          %292 = vmatpush.msra.mxu0 0.0
          %293 = vmatpush.msra.mxu0 0.0
          %294 = vmatpush.msra.mxu0 0.0
          %295 = vmatpush.msra.mxu0 0.0
          %296 = vmatpush.msra.mxu0 0.0
          %297 = vmatpush.msra.mxu0 0.0
          %298 = vmatpush.msra.mxu0 0.0
          %299 = vmatpush.msra.mxu0 0.0
          %300 = vmatpush.msra.mxu0 0.0
          %301 = vmatpush.msra.mxu0 %v279
          %302 = vmatpush.msra.mxu0 %v278
          %303 = vmatpush.msra.mxu0 %v277
          %304 = vmatpush.msra.mxu0 %v276
          %305 = vmatmul.f32.gmra.mxu0 %v287
          %v306 = vpop.f32.mrf.mxu0
          %v307 = vadd.f32 %v283, %v306
          %308 = vdwg.mxu0
          %s309 = smul.u32 %s268, 8
          %s310 = scalar_lea.vmem %s245, %s309 [#allocation2]
          %vm311 = vcmask 64512
          %312 = vst.msk [vmem:[%s310] sm:$0xff] %vm311, %v307
          %314 = vrot.lane.b32.xlu0 %v307, 120
          %v315 = vpop.permute.xlu0 %314
          %s317 = scalar_lea.vmem %s252, %s309 [#allocation4]
          %318 = vst.msk [vmem:[%s317] sm:$0xff] %vm311, %v315
          %319 = vrot.lane.b32.xlu0 %v307, 112
          %v320 = vpop.permute.xlu0 %319
          %s322 = scalar_lea.vmem %s259, %s309 [#allocation6]
          %323 = vst.msk [vmem:[%s322] sm:$0xff] %vm311, %v320
        $region37: #{tpu_custom_call.1} parent=31 // loop_footer
          %s272 = sadd.s32 1, %s268
        $region38: #{tpu_custom_call.1} parent=31 // loop_footer_branch
          %267 = sbr.rel target = $region34
        $region39: #{tpu_custom_call.1} parent=31 // loop_exit
          _
        %s324 = sand.u32 %s115, 1
        %s325 = scalar_lea.sflag [#allocation3], %s324
        %s326 = sand.u32 %s115, 1
        %s327 = smul.addr %s326, 32
        %s328 = scalar_lea.vmem [#allocation2], %s327
        %s329 = sand.u32 %s23, 1
        %s330 = scalar_lea.sflag [#allocation5], %s329
        %s331 = sand.u32 %s143, 1
        %s332 = smul.addr %s331, 32
        %s333 = scalar_lea.vmem [#allocation4], %s332
        %s334 = sand.u32 %s23, 1
        %s335 = scalar_lea.sflag [#allocation5], %s334
        %s336 = sand.u32 %s171, 1
        %s337 = smul.addr %s336, 32
        %s338 = scalar_lea.vmem [#allocation6], %s337
        // Predicated region
        $region40: #{tpu_custom_call.1} parent=31 // pred_check
          %p339 = pneg %p125
        $region41: #{tpu_custom_call.1} parent=31 // pred_check_branch
          %341 = sbr.rel (%p339) target = $region43
        $region42: #{tpu_custom_call.1} parent=31 // pred_region
          %343 = vsyncadd %s325, 0
          %s344 = smul.addr %s27, 4
          %s345 = sadd.s32 %s28, %s344
          %s346 = smul.addr %s345, 8
          %s347 = scalar_lea.hbm %s3, %s346
          %s348 = sshll.u32 %s328, 4
          %s349 = int_to_ptr.vmem [resolvable:$true] %s348
          %s350 = sshll.u32 %s347, 4
          %s351 = int_to_ptr.hbm [resolvable:$true] %s350
          %356 = dma.vmem_to_hbm [thread:$0]  %s349, 512, %s351, %s325, 128, 128, 8
        $region43: #{tpu_custom_call.1} parent=31 // pred_fallthru
          _
        // Predicated region
        $region44: #{tpu_custom_call.1} parent=31 // pred_check
          %p357 = pneg %p153
        $region45: #{tpu_custom_call.1} parent=31 // pred_check_branch
          %359 = sbr.rel (%p357) target = $region47
        $region46: #{tpu_custom_call.1} parent=31 // pred_region
          %361 = vsyncadd %s330, 0
          %s362 = smul.addr %s27, 4
          %s363 = sadd.s32 %s28, %s362
          %s364 = smul.addr %s363, 8
          %s365 = scalar_lea.hbm %s4, %s364
          %s366 = sshll.u32 %s333, 4
          %s367 = int_to_ptr.vmem [resolvable:$true] %s366
          %s368 = sshll.u32 %s365, 4
          %s369 = int_to_ptr.hbm [resolvable:$true] %s368
          %374 = dma.vmem_to_hbm [thread:$0]  %s367, 512, %s369, %s330, 128, 128, 8
        $region47: #{tpu_custom_call.1} parent=31 // pred_fallthru
          _
        // Predicated region
        $region48: #{tpu_custom_call.1} parent=31 // pred_check
          %p375 = pneg %p181
        $region49: #{tpu_custom_call.1} parent=31 // pred_check_branch
          %377 = sbr.rel (%p375) target = $region51
        $region50: #{tpu_custom_call.1} parent=31 // pred_region
          %379 = vsyncadd %s335, 0
          %s380 = smul.addr %s27, 4
          %s381 = sadd.s32 %s28, %s380
          %s382 = smul.addr %s381, 8
          %s383 = scalar_lea.hbm %s5, %s382
          %s384 = sshll.u32 %s338, 4
          %s385 = int_to_ptr.vmem [resolvable:$true] %s384
          %s386 = sshll.u32 %s383, 4
          %s387 = int_to_ptr.hbm [resolvable:$true] %s386
          %392 = dma.vmem_to_hbm [thread:$0]  %s385, 512, %s387, %s335, 128, 128, 8
        $region51: #{tpu_custom_call.1} parent=31 // pred_fallthru
          _
      $region32: #{tpu_custom_call.1} parent=5 // pred_fallthru
        _
      %p393 = scmp.le.s32.totalorder 2, %s18
      // Predicated region
      $region52: #{tpu_custom_call.1} parent=5 // pred_check
        %p394 = pneg %p393
      $region53: #{tpu_custom_call.1} parent=5 // pred_check_branch
        %396 = sbr.rel (%p394) target = $region55
      $region54: #{tpu_custom_call.1} parent=5 // pred_region
        %s397 = ssub.s32 %s18, 2
        // Predicated region
        $region56: #{tpu_custom_call.1} parent=54 // pred_check
          %p398 = pneg %p131
        $region57: #{tpu_custom_call.1} parent=54 // pred_check_branch
          %400 = sbr.rel (%p398) target = $region59
        $region58: #{tpu_custom_call.1} parent=54 // pred_region
          %s401 = sand.u32 %s116, 1
          %s402 = scalar_lea.sflag [#allocation3], %s401
          %s403 = sand.u32 %s116, 1
          %s404 = smul.addr %s403, 32
          %s405 = scalar_lea.vmem [#allocation2], %s404
          %407 = dma.done %s402, 512
        $region59: #{tpu_custom_call.1} parent=54 // pred_fallthru
          _
        // Predicated region
        $region60: #{tpu_custom_call.1} parent=54 // pred_check
          %p408 = pneg %p159
        $region61: #{tpu_custom_call.1} parent=54 // pred_check_branch
          %410 = sbr.rel (%p408) target = $region63
        $region62: #{tpu_custom_call.1} parent=54 // pred_region
          %s411 = sand.u32 %s24, 1
          %s412 = scalar_lea.sflag [#allocation5], %s411
          %s413 = sand.u32 %s144, 1
          %s414 = smul.addr %s413, 32
          %s415 = scalar_lea.vmem [#allocation4], %s414
          %417 = dma.done %s412, 512
        $region63: #{tpu_custom_call.1} parent=54 // pred_fallthru
          _
        // Predicated region
        $region64: #{tpu_custom_call.1} parent=54 // pred_check
          %p418 = pneg %p187
        $region65: #{tpu_custom_call.1} parent=54 // pred_check_branch
          %420 = sbr.rel (%p418) target = $region67
        $region66: #{tpu_custom_call.1} parent=54 // pred_region
          %s421 = sand.u32 %s24, 1
          %s422 = scalar_lea.sflag [#allocation5], %s421
          %s423 = sand.u32 %s172, 1
          %s424 = smul.addr %s423, 32
          %s425 = scalar_lea.vmem [#allocation6], %s424
          %427 = dma.done %s422, 512
        $region67: #{tpu_custom_call.1} parent=54 // pred_fallthru
          _
      $region55: #{tpu_custom_call.1} parent=5 // pred_fallthru
        _
    $region6: #{tpu_custom_call.1} parent=1 // loop_footer
      %s22 = sadd.s32 1, %s18
    $region7: #{tpu_custom_call.1} parent=1 // loop_footer_branch
      %17 = sbr.rel target = $region3
    $region8: #{tpu_custom_call.1} parent=1 // loop_exit
      _
    %428 = vsyncpa [#allocation3], 1
    %s429 = scalar_lea.sflag [#allocation3], 1
    %430 = vsyncpa %s429, 1
    %431 = vsyncpa [#allocation5], 1
    %s432 = scalar_lea.sflag [#allocation5], 1
    %433 = vsyncpa %s432, 1

</llo_original>
